<compile_context>
chip_gen: v5e
topology: v5e:2x2
jax: 0.10.0
libtpu: 0.0.40
codegen_flags: <defaults>
</compile_context>

<pallas_src>
import jax
import jax.numpy as jnp
from jax.experimental import pallas as pl
from jax.experimental.pallas import tpu as pltpu

LANE = 128      # vreg lane width
ROW_PACK = 16   # bf16 sublane packing (rows per vreg)
NEG_BIG = -1e30


def _round_up(n, m):
    return ((n + m - 1) // m) * m


def _cdiv(a, b):
    return -(-a // b)


def mlffnn_kernel(x_ref,
                  w1_ref, b1_ref,
                  w2_ref, b2_ref,
                  w3_ref, b3_ref,
                  w4_ref, b4_ref,
                  o_ref):
    def sigmoid_bf16(z):
        # sigmoid(z) == 0.5*(tanh(z/2)+1): a single EUP tanh per element instead
        # of exp + reciprocal (two EUP pushes). Math stays in f32.
        return (0.5 * (jnp.tanh(0.5 * z) + 1.0)).astype(jnp.bfloat16)

    # Layer 1: ip -> sigmoid   (bf16 matmul inputs, f32 accumulate / elementwise)
    h = sigmoid_bf16(
        jnp.dot(x_ref[...], w1_ref[...], preferred_element_type=jnp.float32) + b1_ref[...])
    # Layer 2: HL1 -> sigmoid
    h = sigmoid_bf16(
        jnp.dot(h, w2_ref[...], preferred_element_type=jnp.float32) + b2_ref[...])
    # Layer 3: HL2 -> sigmoid
    h = sigmoid_bf16(
        jnp.dot(h, w3_ref[...], preferred_element_type=jnp.float32) + b3_ref[...])

    # Output layer. Padded class columns already carry a -1e30 bias (and zero
    # weight columns), so they are masked before softmax with no extra VPU work.
    logits = jnp.dot(h, w4_ref[...], preferred_element_type=jnp.float32) + b4_ref[...]
    m = jnp.max(logits, axis=-1, keepdims=True)
    e = jnp.exp(logits - m)
    denom = jnp.sum(e, axis=-1, keepdims=True)
    # Exact reciprocal keeps the row-sum==1 property tight (~1e-4).
    o_ref[...] = (e * pl.reciprocal(denom)).astype(o_ref.dtype)


def _choose_batch_tile(B, block_b):
    """Pick a batch tile that (a) gives >=2 grid steps when the batch supports it
    (v7x megacore), (b) is 16-row aligned (bf16 sublane packing), and (c) keeps
    the padded batch within one partial tile of the real batch."""
    Bq = _round_up(B, ROW_PACK)
    if Bq < 2 * ROW_PACK:
        return Bq, Bq                       # too small to split usefully
    n_tiles = max(2, _cdiv(Bq, block_b))    # >=2 tiles -> both TCs busy on v7x
    TB = _round_up(_cdiv(Bq, n_tiles), ROW_PACK)
    Bp = _round_up(Bq, TB)
    return TB, Bp


def mlffnn_forward(x, params, *, block_b=512):
    """x: (B, input_size) float; params: dict of (in,out) weights, (1,out) biases."""
    B, in_size = x.shape
    hid = params["w1"].shape[1]
    out_size = params["w4"].shape[1]

    # Lane-align every feature dim; tile the batch dim.
    IP = _round_up(in_size, LANE)
    HP = _round_up(hid, LANE)
    OP = _round_up(out_size, LANE)
    TB, Bp = _choose_batch_tile(B, block_b)

    def pad2(a, rows, cols, dtype):
        return jnp.pad(a, ((0, rows - a.shape[0]), (0, cols - a.shape[1]))).astype(dtype)

    xb = pad2(x, Bp, IP, jnp.bfloat16)
    w1 = pad2(params["w1"], IP, HP, jnp.bfloat16)
    b1 = pad2(params["b1"], 1, HP, jnp.float32)
    w2 = pad2(params["w2"], HP, HP, jnp.bfloat16)
    b2 = pad2(params["b2"], 1, HP, jnp.float32)
    w3 = pad2(params["w3"], HP, HP, jnp.bfloat16)
    b3 = pad2(params["b3"], 1, HP, jnp.float32)
    w4 = pad2(params["w4"], HP, OP, jnp.bfloat16)
    # b4: pad the fake class columns with -1e30 (f32) so the kernel needs no mask.
    b4 = jnp.pad(params["b4"].astype(jnp.float32),
                 ((0, 0), (0, OP - out_size)),
                 constant_values=NEG_BIG)

    grid = (Bp // TB,)

    def batch_tiled(shape):
        return pl.BlockSpec(shape, lambda i: (i, 0))

    def resident(shape):
        # Constant index_map -> block fetched once; single-buffer it to halve the
        # VMEM held by weights (default pipelining would double-buffer).
        return pl.BlockSpec(shape, lambda i: (0, 0), pipeline_mode=pl.Buffered(1))

    in_specs = [
        batch_tiled((TB, IP)),
        resident((IP, HP)), resident((1, HP)),
        resident((HP, HP)), resident((1, HP)),
        resident((HP, HP)), resident((1, HP)),
        resident((HP, OP)), resident((1, OP)),
    ]
    out_spec = batch_tiled((TB, OP))

    weights = (w1, b1, w2, b2, w3, b3, w4, b4)

    # Explicit VMEM budget: single-buffered resident weights + double-buffered
    # x / out tiles + slack. Floor 32 MiB, cap 60 MiB (safe on v7x's 64 MiB VMEM,
    # well under v5e/v6e's 128 MiB physical).
    weight_bytes = sum(int(a.size) * a.dtype.itemsize for a in weights)
    io_tile_bytes = 2 * TB * IP * 2 + 2 * TB * OP * 4
    vmem_limit = min(max(weight_bytes + io_tile_bytes + (8 << 20), 32 << 20), 60 << 20)

    flops = 2 * Bp * (IP * HP + 2 * HP * HP + HP * OP)
    transcendentals = Bp * (3 * HP + OP)
    bytes_accessed = (
        xb.size * xb.dtype.itemsize
        + sum(int(a.size) * a.dtype.itemsize for a in weights)
        + Bp * OP * 4
    )

    out_padded = pl.pallas_call(
        mlffnn_kernel,
        out_shape=jax.ShapeDtypeStruct((Bp, OP), jnp.float32),
        grid=grid,
        in_specs=in_specs,
        out_specs=out_spec,
        compiler_params=pltpu.CompilerParams(
            dimension_semantics=("parallel",),
            vmem_limit_bytes=int(vmem_limit),
        ),
        cost_estimate=pl.CostEstimate(
            flops=flops,
            transcendentals=transcendentals,
            bytes_accessed=bytes_accessed,
        ),
    )(xb, *weights)

    # Strip batch/class padding.
    return out_padded[:B, :out_size]


def init_params(key, input_size, hidden_size, output_size):
    """Deterministic init mimicking nn.Linear's uniform(-1/sqrt(fan_in), 1/sqrt(fan_in))."""
    def linear(k, fan_in, fan_out):
        kw, kb = jax.random.split(k)
        bound = 1.0 / jnp.sqrt(fan_in)
        w = jax.random.uniform(kw, (fan_in, fan_out), jnp.float32, -bound, bound)
        b = jax.random.uniform(kb, (1, fan_out), jnp.float32, -bound, bound)
        return w, b

    k1, k2, k3, k4 = jax.random.split(key, 4)
    w1, b1 = linear(k1, input_size, hidden_size)
    w2, b2 = linear(k2, hidden_size, hidden_size)
    w3, b3 = linear(k3, hidden_size, hidden_size)
    w4, b4 = linear(k4, hidden_size, output_size)
    return dict(w1=w1, b1=b1, w2=w2, b2=b2, w3=w3, b3=b3, w4=w4, b4=b4)


def reference_forward(x, p):
    h = jax.nn.sigmoid(x @ p["w1"] + p["b1"])
    h = jax.nn.sigmoid(h @ p["w2"] + p["b2"])
    h = jax.nn.sigmoid(h @ p["w3"] + p["b3"])
    return jax.nn.softmax(h @ p["w4"] + p["b4"], axis=-1)


if __name__ == "__main__":
    input_size, hidden_size, output_size = 16, 32, 8
    batch = 8

    key = jax.random.PRNGKey(0)
    kx, kp = jax.random.split(key)
    x = jax.random.normal(kx, (batch, input_size), jnp.float32)
    params = init_params(kp, input_size, hidden_size, output_size)

    out = jax.block_until_ready(mlffnn_forward(x, params))

    ref = reference_forward(x, params)
    assert out.shape == (batch, output_size)
    # bf16 matmul inputs -> compare against the f32 reference at bf16-level tolerance.
    assert jnp.allclose(out, ref, atol=2e-2, rtol=2e-2), float(jnp.max(jnp.abs(out - ref)))
    # Softmax normalization stays in f32 with an exact reciprocal.
    assert jnp.allclose(jnp.sum(out, axis=-1), 1.0, atol=1e-4)

    print("KERNEL_OK")
</pallas_src>

<mosaic_0001>
module attributes {stable_mosaic.version = 11 : i64} {
  func.func @mlffnn_kernel(%arg0: i32, %arg1: memref<16x128xbf16, #tpu.memory_space<vmem>>, %arg2: memref<128x128xbf16, #tpu.memory_space<vmem>>, %arg3: memref<1x128xf32, #tpu.memory_space<vmem>>, %arg4: memref<128x128xbf16, #tpu.memory_space<vmem>>, %arg5: memref<1x128xf32, #tpu.memory_space<vmem>>, %arg6: memref<128x128xbf16, #tpu.memory_space<vmem>>, %arg7: memref<1x128xf32, #tpu.memory_space<vmem>>, %arg8: memref<128x128xbf16, #tpu.memory_space<vmem>>, %arg9: memref<1x128xf32, #tpu.memory_space<vmem>>, %arg10: memref<16x128xf32, #tpu.memory_space<vmem>>) attributes {dimension_semantics = [#tpu.dimension_semantics<parallel>], iteration_bounds = array<i64: 1>, scalar_prefetch = 0 : i64, scratch_operands = 0 : i64, tpu.core_type = #tpu.core_type<tc>, window_params = [{transform_indices = @transform_0, window_bounds = array<i64: 16, 128>}, {pipeline_mode = #tpu.pipeline_mode<synchronous>, transform_indices = @transform_1, window_bounds = array<i64: 128, 128>}, {pipeline_mode = #tpu.pipeline_mode<synchronous>, transform_indices = @transform_2, window_bounds = array<i64: 1, 128>}, {pipeline_mode = #tpu.pipeline_mode<synchronous>, transform_indices = @transform_3, window_bounds = array<i64: 128, 128>}, {pipeline_mode = #tpu.pipeline_mode<synchronous>, transform_indices = @transform_4, window_bounds = array<i64: 1, 128>}, {pipeline_mode = #tpu.pipeline_mode<synchronous>, transform_indices = @transform_5, window_bounds = array<i64: 128, 128>}, {pipeline_mode = #tpu.pipeline_mode<synchronous>, transform_indices = @transform_6, window_bounds = array<i64: 1, 128>}, {pipeline_mode = #tpu.pipeline_mode<synchronous>, transform_indices = @transform_7, window_bounds = array<i64: 128, 128>}, {pipeline_mode = #tpu.pipeline_mode<synchronous>, transform_indices = @transform_8, window_bounds = array<i64: 1, 128>}, {transform_indices = @transform_9, window_bounds = array<i64: 16, 128>}]} {
    %c0 = arith.constant 0 : index
    %c0_0 = arith.constant 0 : index
    %0 = vector.load %arg1[%c0, %c0_0] : memref<16x128xbf16, #tpu.memory_space<vmem>>, vector<16x128xbf16>
    %c0_1 = arith.constant 0 : index
    %c0_2 = arith.constant 0 : index
    %1 = vector.load %arg2[%c0_1, %c0_2] : memref<128x128xbf16, #tpu.memory_space<vmem>>, vector<128x128xbf16>
    %cst = arith.constant dense<0.000000e+00> : vector<16x128xf32>
    %2 = tpu.matmul %0, %1, %cst {dimension_numbers = #tpu.dot_dimension_numbers<[1], [0], [0], [1], [0, 0, 1, 1], [], []>} : vector<16x128xbf16>, vector<128x128xbf16>, vector<16x128xf32> -> vector<16x128xf32>
    %c0_3 = arith.constant 0 : index
    %c0_4 = arith.constant 0 : index
    %3 = vector.load %arg3[%c0_3, %c0_4] : memref<1x128xf32, #tpu.memory_space<vmem>>, vector<1x128xf32>
    %4 = vector.broadcast %3 : vector<1x128xf32> to vector<16x128xf32>
    %5 = arith.addf %2, %4 : vector<16x128xf32>
    %cst_5 = arith.constant 5.000000e-01 : f32
    %6 = vector.broadcast %cst_5 : f32 to vector<16x128xf32>
    %7 = arith.mulf %6, %5 : vector<16x128xf32>
    %8 = math.tanh %7 : vector<16x128xf32>
    %cst_6 = arith.constant 1.000000e+00 : f32
    %9 = vector.broadcast %cst_6 : f32 to vector<16x128xf32>
    %10 = arith.addf %8, %9 : vector<16x128xf32>
    %cst_7 = arith.constant 5.000000e-01 : f32
    %11 = vector.broadcast %cst_7 : f32 to vector<16x128xf32>
    %12 = arith.mulf %11, %10 : vector<16x128xf32>
    %13 = arith.truncf %12 : vector<16x128xf32> to vector<16x128xbf16>
    %c0_8 = arith.constant 0 : index
    %c0_9 = arith.constant 0 : index
    %14 = vector.load %arg4[%c0_8, %c0_9] : memref<128x128xbf16, #tpu.memory_space<vmem>>, vector<128x128xbf16>
    %cst_10 = arith.constant dense<0.000000e+00> : vector<16x128xf32>
    %15 = tpu.matmul %13, %14, %cst_10 {dimension_numbers = #tpu.dot_dimension_numbers<[1], [0], [0], [1], [0, 0, 1, 1], [], []>} : vector<16x128xbf16>, vector<128x128xbf16>, vector<16x128xf32> -> vector<16x128xf32>
    %c0_11 = arith.constant 0 : index
    %c0_12 = arith.constant 0 : index
    %16 = vector.load %arg5[%c0_11, %c0_12] : memref<1x128xf32, #tpu.memory_space<vmem>>, vector<1x128xf32>
    %17 = vector.broadcast %16 : vector<1x128xf32> to vector<16x128xf32>
    %18 = arith.addf %15, %17 : vector<16x128xf32>
    %cst_13 = arith.constant 5.000000e-01 : f32
    %19 = vector.broadcast %cst_13 : f32 to vector<16x128xf32>
    %20 = arith.mulf %19, %18 : vector<16x128xf32>
    %21 = math.tanh %20 : vector<16x128xf32>
    %cst_14 = arith.constant 1.000000e+00 : f32
    %22 = vector.broadcast %cst_14 : f32 to vector<16x128xf32>
    %23 = arith.addf %21, %22 : vector<16x128xf32>
    %cst_15 = arith.constant 5.000000e-01 : f32
    %24 = vector.broadcast %cst_15 : f32 to vector<16x128xf32>
    %25 = arith.mulf %24, %23 : vector<16x128xf32>
    %26 = arith.truncf %25 : vector<16x128xf32> to vector<16x128xbf16>
    %c0_16 = arith.constant 0 : index
    %c0_17 = arith.constant 0 : index
    %27 = vector.load %arg6[%c0_16, %c0_17] : memref<128x128xbf16, #tpu.memory_space<vmem>>, vector<128x128xbf16>
    %cst_18 = arith.constant dense<0.000000e+00> : vector<16x128xf32>
    %28 = tpu.matmul %26, %27, %cst_18 {dimension_numbers = #tpu.dot_dimension_numbers<[1], [0], [0], [1], [0, 0, 1, 1], [], []>} : vector<16x128xbf16>, vector<128x128xbf16>, vector<16x128xf32> -> vector<16x128xf32>
    %c0_19 = arith.constant 0 : index
    %c0_20 = arith.constant 0 : index
    %29 = vector.load %arg7[%c0_19, %c0_20] : memref<1x128xf32, #tpu.memory_space<vmem>>, vector<1x128xf32>
    %30 = vector.broadcast %29 : vector<1x128xf32> to vector<16x128xf32>
    %31 = arith.addf %28, %30 : vector<16x128xf32>
    %cst_21 = arith.constant 5.000000e-01 : f32
    %32 = vector.broadcast %cst_21 : f32 to vector<16x128xf32>
    %33 = arith.mulf %32, %31 : vector<16x128xf32>
    %34 = math.tanh %33 : vector<16x128xf32>
    %cst_22 = arith.constant 1.000000e+00 : f32
    %35 = vector.broadcast %cst_22 : f32 to vector<16x128xf32>
    %36 = arith.addf %34, %35 : vector<16x128xf32>
    %cst_23 = arith.constant 5.000000e-01 : f32
    %37 = vector.broadcast %cst_23 : f32 to vector<16x128xf32>
    %38 = arith.mulf %37, %36 : vector<16x128xf32>
    %39 = arith.truncf %38 : vector<16x128xf32> to vector<16x128xbf16>
    %c0_24 = arith.constant 0 : index
    %c0_25 = arith.constant 0 : index
    %40 = vector.load %arg8[%c0_24, %c0_25] : memref<128x128xbf16, #tpu.memory_space<vmem>>, vector<128x128xbf16>
    %cst_26 = arith.constant dense<0.000000e+00> : vector<16x128xf32>
    %41 = tpu.matmul %39, %40, %cst_26 {dimension_numbers = #tpu.dot_dimension_numbers<[1], [0], [0], [1], [0, 0, 1, 1], [], []>} : vector<16x128xbf16>, vector<128x128xbf16>, vector<16x128xf32> -> vector<16x128xf32>
    %c0_27 = arith.constant 0 : index
    %c0_28 = arith.constant 0 : index
    %42 = vector.load %arg9[%c0_27, %c0_28] : memref<1x128xf32, #tpu.memory_space<vmem>>, vector<1x128xf32>
    %43 = vector.broadcast %42 : vector<1x128xf32> to vector<16x128xf32>
    %44 = arith.addf %41, %43 : vector<16x128xf32>
    %cst_29 = arith.constant dense<0xFF800000> : vector<16xf32>
    %45 = vector.multi_reduction <maximumf>, %44, %cst_29 [1] : vector<16x128xf32> to vector<16xf32>
    %46 = vector.shape_cast %45 : vector<16xf32> to vector<16x1xf32>
    %47 = vector.broadcast %46 : vector<16x1xf32> to vector<16x128xf32>
    %48 = arith.subf %44, %47 : vector<16x128xf32>
    %49 = math.exp %48 : vector<16x128xf32>
    %cst_30 = arith.constant dense<0.000000e+00> : vector<16xf32>
    %50 = vector.multi_reduction <add>, %49, %cst_30 [1] : vector<16x128xf32> to vector<16xf32>
    %51 = vector.shape_cast %50 : vector<16xf32> to vector<16x1xf32>
    %52 = tpu.reciprocal %51 : vector<16x1xf32> -> vector<16x1xf32>
    %53 = vector.broadcast %52 : vector<16x1xf32> to vector<16x128xf32>
    %54 = arith.mulf %49, %53 : vector<16x128xf32>
    %c0_31 = arith.constant 0 : index
    %c0_32 = arith.constant 0 : index
    %55 = vector.load %arg10[%c0_31, %c0_32] : memref<16x128xf32, #tpu.memory_space<vmem>>, vector<16x128xf32>
    tpu.vector_store %arg10[%c0_31, %c0_32], %54 {strides = array<i32>} : memref<16x128xf32, #tpu.memory_space<vmem>>, vector<16x128xf32>,
    return
  }
  func.func @transform_0(%arg0: i32) -> (i32, i32) {
    %c0_i32 = arith.constant 0 : i32
    %c0_i32_0 = arith.constant 0 : i32
    return %arg0, %c0_i32 : i32, i32
  }
  func.func @transform_1(%arg0: i32) -> (i32, i32) {
    %c0_i32 = arith.constant 0 : i32
    %c0_i32_0 = arith.constant 0 : i32
    %c0_i32_1 = arith.constant 0 : i32
    return %c0_i32, %c0_i32_0 : i32, i32
  }
  func.func @transform_2(%arg0: i32) -> (i32, i32) {
    %c0_i32 = arith.constant 0 : i32
    %c0_i32_0 = arith.constant 0 : i32
    %c0_i32_1 = arith.constant 0 : i32
    return %c0_i32, %c0_i32_0 : i32, i32
  }
  func.func @transform_3(%arg0: i32) -> (i32, i32) {
    %c0_i32 = arith.constant 0 : i32
    %c0_i32_0 = arith.constant 0 : i32
    %c0_i32_1 = arith.constant 0 : i32
    return %c0_i32, %c0_i32_0 : i32, i32
  }
  func.func @transform_4(%arg0: i32) -> (i32, i32) {
    %c0_i32 = arith.constant 0 : i32
    %c0_i32_0 = arith.constant 0 : i32
    %c0_i32_1 = arith.constant 0 : i32
    return %c0_i32, %c0_i32_0 : i32, i32
  }
  func.func @transform_5(%arg0: i32) -> (i32, i32) {
    %c0_i32 = arith.constant 0 : i32
    %c0_i32_0 = arith.constant 0 : i32
    %c0_i32_1 = arith.constant 0 : i32
    return %c0_i32, %c0_i32_0 : i32, i32
  }
  func.func @transform_6(%arg0: i32) -> (i32, i32) {
    %c0_i32 = arith.constant 0 : i32
    %c0_i32_0 = arith.constant 0 : i32
    %c0_i32_1 = arith.constant 0 : i32
    return %c0_i32, %c0_i32_0 : i32, i32
  }
  func.func @transform_7(%arg0: i32) -> (i32, i32) {
    %c0_i32 = arith.constant 0 : i32
    %c0_i32_0 = arith.constant 0 : i32
    %c0_i32_1 = arith.constant 0 : i32
    return %c0_i32, %c0_i32_0 : i32, i32
  }
  func.func @transform_8(%arg0: i32) -> (i32, i32) {
    %c0_i32 = arith.constant 0 : i32
    %c0_i32_0 = arith.constant 0 : i32
    %c0_i32_1 = arith.constant 0 : i32
    return %c0_i32, %c0_i32_0 : i32, i32
  }
  func.func @transform_9(%arg0: i32) -> (i32, i32) {
    %c0_i32 = arith.constant 0 : i32
    %c0_i32_0 = arith.constant 0 : i32
    return %arg0, %c0_i32 : i32, i32
  }
}

</mosaic_0001>

<llo_original>
// kernel: tpu_custom_call.1
$region0: #{tpu_custom_call.1}
  #allocation0 [shape = 'u32[]', space=smem, size = 0x4, offset = 0x4, fixed_abs, tag = 'smem constant byte address 0x4 - core index']
  #allocation1 [shape = 'u32[72,128]{1,0:T(1,128)}', space=vmem, size = 0x9000, scoped, tag = 'internal scratch']
  %s0 = inlined_call_operand.hbm [shape: bf16[16,128], index: 0, kind: input, shape index: {}]
  %s1 = inlined_call_operand.hbm [shape: bf16[128,128], index: 1, kind: input, shape index: {}]
  %s2 = inlined_call_operand.vmem [shape: f32[1,128], index: 2, kind: input, shape index: {}]
  %s3 = inlined_call_operand.hbm [shape: bf16[128,128], index: 3, kind: input, shape index: {}]
  %s4 = inlined_call_operand.vmem [shape: f32[1,128], index: 4, kind: input, shape index: {}]
  %s5 = inlined_call_operand.hbm [shape: bf16[128,128], index: 5, kind: input, shape index: {}]
  %s6 = inlined_call_operand.vmem [shape: f32[1,128], index: 6, kind: input, shape index: {}]
  %s7 = inlined_call_operand.hbm [shape: bf16[128,128], index: 7, kind: input, shape index: {}]
  %s8 = inlined_call_operand.vmem [shape: f32[1,128], index: 8, kind: input, shape index: {}]
  %s9 = inlined_call_operand.hbm [shape: f32[16,128], index: 9, kind: output, shape index: {}]
  %s10 = sld [smem:[#allocation0]]
  $region66: #{tpu_custom_call.1} parent=0
    _
  %s12 = ssub.s32 1, %s10
  %s13 = scalar_select 0, %s12, %s10
  $region1: #{tpu_custom_call.1} parent=0
    #allocation2 [shape = 'u8[4096]{0}', space=vmem, size = 0x1000, scoped, tag = 'input window, operand 0, single buffered']
    #allocation3 [shape = 's32[1]{0}', space=sflag, size = 0x4, scoped, tag = 'scoped memory for tpu_custom_call.1']
    #allocation4 [shape = 's32[1]{0}', space=sflag, size = 0x4, scoped, tag = 'scoped memory for tpu_custom_call.1']
    #allocation5 [shape = 'u8[32768]{0}', space=vmem, size = 0x8000, scoped, tag = 'input window, operand 1, single buffered']
    #allocation6 [shape = 's32[1]{0}', space=sflag, size = 0x4, scoped, tag = 'scoped memory for tpu_custom_call.1']
    #allocation7 [shape = 'u8[32768]{0}', space=vmem, size = 0x8000, scoped, tag = 'input window, operand 3, single buffered']
    #allocation8 [shape = 'u8[32768]{0}', space=vmem, size = 0x8000, scoped, tag = 'input window, operand 5, single buffered']
    #allocation9 [shape = 's32[1]{0}', space=sflag, size = 0x4, scoped, tag = 'scoped memory for tpu_custom_call.1']
    #allocation10 [shape = 'u8[32768]{0}', space=vmem, size = 0x8000, scoped, tag = 'input window, operand 7, single buffered']
    #allocation11 [shape = 'u8[8192]{0}', space=vmem, size = 0x2000, scoped, tag = 'output window, operand 0, single buffered']
    %14 = vsyncpa [#allocation3], 0
    %15 = vsyncpa [#allocation6], 0
    %16 = vsyncpa [#allocation9], 0
    %17 = vsyncpa [#allocation4], 0
    // Predicated region
    $region2: #{tpu_custom_call.1} parent=1 // pred_check
      _
    $region3: #{tpu_custom_call.1} parent=1 // pred_check_branch
      %19 = sbr.rel (0) target = $region5
    $region4: #{tpu_custom_call.1} parent=1 // pred_region
      %21 = vsyncadd [#allocation3], 0
      %s22 = sshll.u32 %s0, 4
      %s23 = int_to_ptr.hbm [resolvable:$true] %s22
      %s24 = sshll.u32 [#allocation2], 4
      %s25 = int_to_ptr.vmem [resolvable:$true] %s24
      %30 = dma.hbm_to_vmem [thread:$0]  %s23, 128, %s25, [#allocation3], 64, 64, 4
    $region5: #{tpu_custom_call.1} parent=1 // pred_fallthru
      _
    // Predicated region
    $region6: #{tpu_custom_call.1} parent=1 // pred_check
      _
    $region7: #{tpu_custom_call.1} parent=1 // pred_check_branch
      %32 = sbr.rel (0) target = $region9
    $region8: #{tpu_custom_call.1} parent=1 // pred_region
      %34 = vsyncadd [#allocation6], 0
      %s35 = sshll.u32 %s1, 4
      %s36 = int_to_ptr.hbm [resolvable:$true] %s35
      %s37 = sshll.u32 [#allocation5], 4
      %s38 = int_to_ptr.vmem [resolvable:$true] %s37
      %43 = dma.hbm_to_vmem [thread:$0]  %s36, 1024, %s38, [#allocation6], 64, 64, 4
    $region9: #{tpu_custom_call.1} parent=1 // pred_fallthru
      _
    // Predicated region
    $region10: #{tpu_custom_call.1} parent=1 // pred_check
      _
    $region11: #{tpu_custom_call.1} parent=1 // pred_check_branch
      %45 = sbr.rel (0) target = $region13
    $region12: #{tpu_custom_call.1} parent=1 // pred_region
      _
    $region13: #{tpu_custom_call.1} parent=1 // pred_fallthru
      _
    // Predicated region
    $region14: #{tpu_custom_call.1} parent=1 // pred_check
      _
    $region15: #{tpu_custom_call.1} parent=1 // pred_check_branch
      %47 = sbr.rel (0) target = $region17
    $region16: #{tpu_custom_call.1} parent=1 // pred_region
      %49 = vsyncadd [#allocation6], 0
      %s50 = sshll.u32 %s3, 4
      %s51 = int_to_ptr.hbm [resolvable:$true] %s50
      %s52 = sshll.u32 [#allocation7], 4
      %s53 = int_to_ptr.vmem [resolvable:$true] %s52
      %58 = dma.hbm_to_vmem [thread:$0]  %s51, 1024, %s53, [#allocation6], 64, 64, 4
    $region17: #{tpu_custom_call.1} parent=1 // pred_fallthru
      _
    // Predicated region
    $region18: #{tpu_custom_call.1} parent=1 // pred_check
      _
    $region19: #{tpu_custom_call.1} parent=1 // pred_check_branch
      %60 = sbr.rel (0) target = $region21
    $region20: #{tpu_custom_call.1} parent=1 // pred_region
      _
    $region21: #{tpu_custom_call.1} parent=1 // pred_fallthru
      _
    // Predicated region
    $region22: #{tpu_custom_call.1} parent=1 // pred_check
      _
    $region23: #{tpu_custom_call.1} parent=1 // pred_check_branch
      %62 = sbr.rel (0) target = $region25
    $region24: #{tpu_custom_call.1} parent=1 // pred_region
      %64 = vsyncadd [#allocation9], 0
      %s65 = sshll.u32 %s5, 4
      %s66 = int_to_ptr.hbm [resolvable:$true] %s65
      %s67 = sshll.u32 [#allocation8], 4
      %s68 = int_to_ptr.vmem [resolvable:$true] %s67
      %73 = dma.hbm_to_vmem [thread:$0]  %s66, 1024, %s68, [#allocation9], 64, 64, 4
    $region25: #{tpu_custom_call.1} parent=1 // pred_fallthru
      _
    // Predicated region
    $region26: #{tpu_custom_call.1} parent=1 // pred_check
      _
    $region27: #{tpu_custom_call.1} parent=1 // pred_check_branch
      %75 = sbr.rel (0) target = $region29
    $region28: #{tpu_custom_call.1} parent=1 // pred_region
      _
    $region29: #{tpu_custom_call.1} parent=1 // pred_fallthru
      _
    // Predicated region
    $region30: #{tpu_custom_call.1} parent=1 // pred_check
      _
    $region31: #{tpu_custom_call.1} parent=1 // pred_check_branch
      %77 = sbr.rel (0) target = $region33
    $region32: #{tpu_custom_call.1} parent=1 // pred_region
      %79 = vsyncadd [#allocation9], 0
      %s80 = sshll.u32 %s7, 4
      %s81 = int_to_ptr.hbm [resolvable:$true] %s80
      %s82 = sshll.u32 [#allocation10], 4
      %s83 = int_to_ptr.vmem [resolvable:$true] %s82
      %88 = dma.hbm_to_vmem [thread:$0]  %s81, 1024, %s83, [#allocation9], 64, 64, 4
    $region33: #{tpu_custom_call.1} parent=1 // pred_fallthru
      _
    // Predicated region
    $region34: #{tpu_custom_call.1} parent=1 // pred_check
      _
    $region35: #{tpu_custom_call.1} parent=1 // pred_check_branch
      %90 = sbr.rel (0) target = $region37
    $region36: #{tpu_custom_call.1} parent=1 // pred_region
      _
    $region37: #{tpu_custom_call.1} parent=1 // pred_fallthru
      _
    // Predicated region
    $region38: #{tpu_custom_call.1} parent=1 // pred_check
      _
    $region39: #{tpu_custom_call.1} parent=1 // pred_check_branch
      %92 = sbr.rel (0) target = $region41
    $region40: #{tpu_custom_call.1} parent=1 // pred_region
      %94 = dma.done [#allocation3], 128
    $region41: #{tpu_custom_call.1} parent=1 // pred_fallthru
      _
    // Predicated region
    $region42: #{tpu_custom_call.1} parent=1 // pred_check
      _
    $region43: #{tpu_custom_call.1} parent=1 // pred_check_branch
      %96 = sbr.rel (0) target = $region45
    $region44: #{tpu_custom_call.1} parent=1 // pred_region
      %98 = dma.done [#allocation6], 1024
    $region45: #{tpu_custom_call.1} parent=1 // pred_fallthru
      _
    // Predicated region
    $region46: #{tpu_custom_call.1} parent=1 // pred_check
      _
    $region47: #{tpu_custom_call.1} parent=1 // pred_check_branch
      %100 = sbr.rel (0) target = $region49
    $region48: #{tpu_custom_call.1} parent=1 // pred_region
      %102 = dma.done [#allocation6], 1024
    $region49: #{tpu_custom_call.1} parent=1 // pred_fallthru
      _
    // Predicated region
    $region50: #{tpu_custom_call.1} parent=1 // pred_check
      _
    $region51: #{tpu_custom_call.1} parent=1 // pred_check_branch
      %104 = sbr.rel (0) target = $region53
    $region52: #{tpu_custom_call.1} parent=1 // pred_region
      %106 = dma.done [#allocation9], 1024
    $region53: #{tpu_custom_call.1} parent=1 // pred_fallthru
      _
    // Predicated region
    $region54: #{tpu_custom_call.1} parent=1 // pred_check
      _
    $region55: #{tpu_custom_call.1} parent=1 // pred_check_branch
      %108 = sbr.rel (0) target = $region57
    $region56: #{tpu_custom_call.1} parent=1 // pred_region
      %110 = dma.done [#allocation9], 1024
    $region57: #{tpu_custom_call.1} parent=1 // pred_fallthru
      _
    %v111 = vld [vmem:[#allocation2] sm:$0xf]
    %v112 = vld [vmem:[#allocation2 + $0x4] sm:$0xf]
    %v113 = vld [vmem:[#allocation5] sm:$0xf]
    %v114 = vld [vmem:[#allocation5 + $0x4] sm:$0xf]
    %v115 = vld [vmem:[#allocation5 + $0x8] sm:$0xf]
    %v116 = vld [vmem:[#allocation5 + $0xc] sm:$0xf]
    %v117 = vld [vmem:[#allocation5 + $0x10] sm:$0xf]
    %v118 = vld [vmem:[#allocation5 + $0x14] sm:$0xf]
    %v119 = vld [vmem:[#allocation5 + $0x18] sm:$0xf]
    %v120 = vld [vmem:[#allocation5 + $0x1c] sm:$0xf]
    %v121 = vld [vmem:[#allocation5 + $0x20] sm:$0xf]
    %v122 = vld [vmem:[#allocation5 + $0x24] sm:$0xf]
    %v123 = vld [vmem:[#allocation5 + $0x28] sm:$0xf]
    %v124 = vld [vmem:[#allocation5 + $0x2c] sm:$0xf]
    %v125 = vld [vmem:[#allocation5 + $0x30] sm:$0xf]
    %v126 = vld [vmem:[#allocation5 + $0x34] sm:$0xf]
    %v127 = vld [vmem:[#allocation5 + $0x38] sm:$0xf]
    %v128 = vld [vmem:[#allocation5 + $0x3c] sm:$0xf]
    %v129 = vld [vmem:[%s2] sm:$0x1]
    %v131 = vperm.slane %v129, 0
    %v135 = vunpack.c.l.b16 %v111
    %v136 = vunpack.c.l.b16 %v112
    %v137 = vpack.c.b16 %v136, %v135
    %v155 = vunpack.c.l.b16 %v113
    %v156 = vunpack.c.l.b16 %v114
    %v157 = vunpack.c.l.b16 %v115
    %v158 = vunpack.c.l.b16 %v116
    %v159 = vunpack.c.l.b16 %v117
    %v160 = vunpack.c.l.b16 %v118
    %v161 = vunpack.c.l.b16 %v119
    %v162 = vunpack.c.l.b16 %v120
    %v163 = vunpack.c.l.b16 %v121
    %v164 = vunpack.c.l.b16 %v122
    %v165 = vunpack.c.l.b16 %v123
    %v166 = vunpack.c.l.b16 %v124
    %v167 = vunpack.c.l.b16 %v125
    %v168 = vunpack.c.l.b16 %v126
    %v169 = vunpack.c.l.b16 %v127
    %v170 = vunpack.c.l.b16 %v128
    %v171 = vpack.c.b16 %v156, %v155
    %v172 = vpack.c.b16 %v158, %v157
    %v173 = vpack.c.b16 %v160, %v159
    %v174 = vpack.c.b16 %v162, %v161
    %v175 = vpack.c.b16 %v164, %v163
    %v176 = vpack.c.b16 %v166, %v165
    %v177 = vpack.c.b16 %v168, %v167
    %v178 = vpack.c.b16 %v170, %v169
    %187 = vmatpush.bf16.msra.mxu0 %v178
    %188 = vmatpush.bf16.msra.mxu0 %v177
    %189 = vmatpush.bf16.msra.mxu0 %v176
    %190 = vmatpush.bf16.msra.mxu0 %v175
    %191 = vmatpush.bf16.msra.mxu0 %v174
    %192 = vmatpush.bf16.msra.mxu0 %v173
    %193 = vmatpush.bf16.msra.mxu0 %v172
    %194 = vmatpush.bf16.msra.mxu0 %v171
    %195 = vmatmul.bf16.gmra.mxu0 %v137
    %v196 = vpop.f32.mrf.mxu0
    %v197 = vadd.f32 %v131, %v196
    %v198 = vpop.f32.mrf.mxu0
    %v199 = vadd.f32 %v131, %v198
    %200 = vdwg.mxu0
    %v201 = vmul.f32 %v197, 0.5
    %v202 = vmul.f32 %v199, 0.5
    %v203 = vtanh.pop %v201
    %v204 = vtanh.pop %v202
    %v205 = vadd.f32 %v203, 1.0
    %v206 = vadd.f32 %v204, 1.0
    %v207 = vmul.f32 %v205, 0.5
    %v208 = vmul.f32 %v206, 0.5
    %v209 = vpack.c.bf16 %v208, %v207
    %v210 = vld [vmem:[#allocation7] sm:$0xf]
    %v211 = vld [vmem:[#allocation7 + $0x4] sm:$0xf]
    %v212 = vld [vmem:[#allocation7 + $0x8] sm:$0xf]
    %v213 = vld [vmem:[#allocation7 + $0xc] sm:$0xf]
    %v214 = vld [vmem:[#allocation7 + $0x10] sm:$0xf]
    %v215 = vld [vmem:[#allocation7 + $0x14] sm:$0xf]
    %v216 = vld [vmem:[#allocation7 + $0x18] sm:$0xf]
    %v217 = vld [vmem:[#allocation7 + $0x1c] sm:$0xf]
    %v218 = vld [vmem:[#allocation7 + $0x20] sm:$0xf]
    %v219 = vld [vmem:[#allocation7 + $0x24] sm:$0xf]
    %v220 = vld [vmem:[#allocation7 + $0x28] sm:$0xf]
    %v221 = vld [vmem:[#allocation7 + $0x2c] sm:$0xf]
    %v222 = vld [vmem:[#allocation7 + $0x30] sm:$0xf]
    %v223 = vld [vmem:[#allocation7 + $0x34] sm:$0xf]
    %v224 = vld [vmem:[#allocation7 + $0x38] sm:$0xf]
    %v225 = vld [vmem:[#allocation7 + $0x3c] sm:$0xf]
    %v226 = vld [vmem:[%s4] sm:$0x1]
    %v228 = vperm.slane %v226, 0
    %v246 = vunpack.c.l.b16 %v210
    %v247 = vunpack.c.l.b16 %v211
    %v248 = vunpack.c.l.b16 %v212
    %v249 = vunpack.c.l.b16 %v213
    %v250 = vunpack.c.l.b16 %v214
    %v251 = vunpack.c.l.b16 %v215
    %v252 = vunpack.c.l.b16 %v216
    %v253 = vunpack.c.l.b16 %v217
    %v254 = vunpack.c.l.b16 %v218
    %v255 = vunpack.c.l.b16 %v219
    %v256 = vunpack.c.l.b16 %v220
    %v257 = vunpack.c.l.b16 %v221
    %v258 = vunpack.c.l.b16 %v222
    %v259 = vunpack.c.l.b16 %v223
    %v260 = vunpack.c.l.b16 %v224
    %v261 = vunpack.c.l.b16 %v225
    %v262 = vpack.c.b16 %v247, %v246
    %v263 = vpack.c.b16 %v249, %v248
    %v264 = vpack.c.b16 %v251, %v250
    %v265 = vpack.c.b16 %v253, %v252
    %v266 = vpack.c.b16 %v255, %v254
    %v267 = vpack.c.b16 %v257, %v256
    %v268 = vpack.c.b16 %v259, %v258
    %v269 = vpack.c.b16 %v261, %v260
    %278 = vmatpush.bf16.msra.mxu0 %v269
    %279 = vmatpush.bf16.msra.mxu0 %v268
    %280 = vmatpush.bf16.msra.mxu0 %v267
    %281 = vmatpush.bf16.msra.mxu0 %v266
    %282 = vmatpush.bf16.msra.mxu0 %v265
    %283 = vmatpush.bf16.msra.mxu0 %v264
    %284 = vmatpush.bf16.msra.mxu0 %v263
    %285 = vmatpush.bf16.msra.mxu0 %v262
    %286 = vmatmul.bf16.gmra.mxu0 %v209
    %v287 = vpop.f32.mrf.mxu0
    %v288 = vadd.f32 %v228, %v287
    %v289 = vpop.f32.mrf.mxu0
    %v290 = vadd.f32 %v228, %v289
    %291 = vdwg.mxu0
    %v292 = vmul.f32 %v288, 0.5
    %v293 = vmul.f32 %v290, 0.5
    %v294 = vtanh.pop %v292
    %v295 = vtanh.pop %v293
    %v296 = vadd.f32 %v294, 1.0
    %v297 = vadd.f32 %v295, 1.0
    %v298 = vmul.f32 %v296, 0.5
    %v299 = vmul.f32 %v297, 0.5
    %v300 = vpack.c.bf16 %v299, %v298
    %v301 = vld [vmem:[#allocation8] sm:$0xf]
    %v302 = vld [vmem:[#allocation8 + $0x4] sm:$0xf]
    %v303 = vld [vmem:[#allocation8 + $0x8] sm:$0xf]
    %v304 = vld [vmem:[#allocation8 + $0xc] sm:$0xf]
    %v305 = vld [vmem:[#allocation8 + $0x10] sm:$0xf]
    %v306 = vld [vmem:[#allocation8 + $0x14] sm:$0xf]
    %v307 = vld [vmem:[#allocation8 + $0x18] sm:$0xf]
    %v308 = vld [vmem:[#allocation8 + $0x1c] sm:$0xf]
    %v309 = vld [vmem:[#allocation8 + $0x20] sm:$0xf]
    %v310 = vld [vmem:[#allocation8 + $0x24] sm:$0xf]
    %v311 = vld [vmem:[#allocation8 + $0x28] sm:$0xf]
    %v312 = vld [vmem:[#allocation8 + $0x2c] sm:$0xf]
    %v313 = vld [vmem:[#allocation8 + $0x30] sm:$0xf]
    %v314 = vld [vmem:[#allocation8 + $0x34] sm:$0xf]
    %v315 = vld [vmem:[#allocation8 + $0x38] sm:$0xf]
    %v316 = vld [vmem:[#allocation8 + $0x3c] sm:$0xf]
    %v317 = vld [vmem:[%s6] sm:$0x1]
    %v319 = vperm.slane %v317, 0
    %v337 = vunpack.c.l.b16 %v301
    %v338 = vunpack.c.l.b16 %v302
    %v339 = vunpack.c.l.b16 %v303
    %v340 = vunpack.c.l.b16 %v304
    %v341 = vunpack.c.l.b16 %v305
    %v342 = vunpack.c.l.b16 %v306
    %v343 = vunpack.c.l.b16 %v307
    %v344 = vunpack.c.l.b16 %v308
    %v345 = vunpack.c.l.b16 %v309
    %v346 = vunpack.c.l.b16 %v310
    %v347 = vunpack.c.l.b16 %v311
    %v348 = vunpack.c.l.b16 %v312
    %v349 = vunpack.c.l.b16 %v313
    %v350 = vunpack.c.l.b16 %v314
    %v351 = vunpack.c.l.b16 %v315
    %v352 = vunpack.c.l.b16 %v316
    %v353 = vpack.c.b16 %v338, %v337
    %v354 = vpack.c.b16 %v340, %v339
    %v355 = vpack.c.b16 %v342, %v341
    %v356 = vpack.c.b16 %v344, %v343
    %v357 = vpack.c.b16 %v346, %v345
    %v358 = vpack.c.b16 %v348, %v347
    %v359 = vpack.c.b16 %v350, %v349
    %v360 = vpack.c.b16 %v352, %v351
    %369 = vmatpush.bf16.msra.mxu0 %v360
    %370 = vmatpush.bf16.msra.mxu0 %v359
    %371 = vmatpush.bf16.msra.mxu0 %v358
    %372 = vmatpush.bf16.msra.mxu0 %v357
    %373 = vmatpush.bf16.msra.mxu0 %v356
    %374 = vmatpush.bf16.msra.mxu0 %v355
    %375 = vmatpush.bf16.msra.mxu0 %v354
    %376 = vmatpush.bf16.msra.mxu0 %v353
    %377 = vmatmul.bf16.gmra.mxu0 %v300
    %v378 = vpop.f32.mrf.mxu0
    %v379 = vadd.f32 %v319, %v378
    %v380 = vpop.f32.mrf.mxu0
    %v381 = vadd.f32 %v319, %v380
    %382 = vdwg.mxu0
    %v383 = vmul.f32 %v379, 0.5
    %v384 = vmul.f32 %v381, 0.5
    %v385 = vtanh.pop %v383
    %v386 = vtanh.pop %v384
    %v387 = vadd.f32 %v385, 1.0
    %v388 = vadd.f32 %v386, 1.0
    %v389 = vmul.f32 %v387, 0.5
    %v390 = vmul.f32 %v388, 0.5
    %v391 = vpack.c.bf16 %v390, %v389
    %v392 = vld [vmem:[#allocation10] sm:$0xf]
    %v393 = vld [vmem:[#allocation10 + $0x4] sm:$0xf]
    %v394 = vld [vmem:[#allocation10 + $0x8] sm:$0xf]
    %v395 = vld [vmem:[#allocation10 + $0xc] sm:$0xf]
    %v396 = vld [vmem:[#allocation10 + $0x10] sm:$0xf]
    %v397 = vld [vmem:[#allocation10 + $0x14] sm:$0xf]
    %v398 = vld [vmem:[#allocation10 + $0x18] sm:$0xf]
    %v399 = vld [vmem:[#allocation10 + $0x1c] sm:$0xf]
    %v400 = vld [vmem:[#allocation10 + $0x20] sm:$0xf]
    %v401 = vld [vmem:[#allocation10 + $0x24] sm:$0xf]
    %v402 = vld [vmem:[#allocation10 + $0x28] sm:$0xf]
    %v403 = vld [vmem:[#allocation10 + $0x2c] sm:$0xf]
    %v404 = vld [vmem:[#allocation10 + $0x30] sm:$0xf]
    %v405 = vld [vmem:[#allocation10 + $0x34] sm:$0xf]
    %v406 = vld [vmem:[#allocation10 + $0x38] sm:$0xf]
    %v407 = vld [vmem:[#allocation10 + $0x3c] sm:$0xf]
    %v408 = vld [vmem:[%s8] sm:$0x1]
    %v410 = vperm.slane %v408, 0
    %v428 = vunpack.c.l.b16 %v392
    %v429 = vunpack.c.l.b16 %v393
    %v430 = vunpack.c.l.b16 %v394
    %v431 = vunpack.c.l.b16 %v395
    %v432 = vunpack.c.l.b16 %v396
    %v433 = vunpack.c.l.b16 %v397
    %v434 = vunpack.c.l.b16 %v398
    %v435 = vunpack.c.l.b16 %v399
    %v436 = vunpack.c.l.b16 %v400
    %v437 = vunpack.c.l.b16 %v401
    %v438 = vunpack.c.l.b16 %v402
    %v439 = vunpack.c.l.b16 %v403
    %v440 = vunpack.c.l.b16 %v404
    %v441 = vunpack.c.l.b16 %v405
    %v442 = vunpack.c.l.b16 %v406
    %v443 = vunpack.c.l.b16 %v407
    %v444 = vpack.c.b16 %v429, %v428
    %v445 = vpack.c.b16 %v431, %v430
    %v446 = vpack.c.b16 %v433, %v432
    %v447 = vpack.c.b16 %v435, %v434
    %v448 = vpack.c.b16 %v437, %v436
    %v449 = vpack.c.b16 %v439, %v438
    %v450 = vpack.c.b16 %v441, %v440
    %v451 = vpack.c.b16 %v443, %v442
    %460 = vmatpush.bf16.msra.mxu0 %v451
    %461 = vmatpush.bf16.msra.mxu0 %v450
    %462 = vmatpush.bf16.msra.mxu0 %v449
    %463 = vmatpush.bf16.msra.mxu0 %v448
    %464 = vmatpush.bf16.msra.mxu0 %v447
    %465 = vmatpush.bf16.msra.mxu0 %v446
    %466 = vmatpush.bf16.msra.mxu0 %v445
    %467 = vmatpush.bf16.msra.mxu0 %v444
    %468 = vmatmul.bf16.gmra.mxu0 %v391
    %v469 = vpop.f32.mrf.mxu0
    %v470 = vadd.f32 %v410, %v469
    %v471 = vpop.f32.mrf.mxu0
    %v472 = vadd.f32 %v410, %v471
    %473 = vdwg.mxu0
    %474 = vmax.xlane.f32.xlu0 %v470
    %v475 = vpop.xlane.xlu0 %474
    %476 = vmax.xlane.f32.xlu0 %v472
    %v477 = vpop.xlane.xlu0 %476
    %v478 = vsub.f32 %v470, %v475
    %v479 = vsub.f32 %v472, %v477
    %v480 = vmul.f32 %v478, 1.442695
    %v481 = vpow.pop %v480
    %v482 = vmul.f32 %v479, 1.442695
    %v483 = vpow.pop %v482
    %484 = vadd.xlane.f32.xlu0 %v481
    %v485 = vpop.xlane.xlu0 %484
    %486 = vadd.xlane.f32.xlu0 %v483
    %v487 = vpop.xlane.xlu0 %486
    %v488 = vrcp.pop %v485
    %v489 = vmul.f32 %v485, %v488
    %v490 = vsub.f32 1.0, %v489
    %v491 = vmul.f32 %v488, %v490
    %v492 = vadd.f32 %v488, %v491
    %vm493 = vweird.f32 %v485
    %vm494 = vweird.f32 %v488
    %vm495 = vmor %vm493, %vm494
    %v496 = vsel %vm495, %v488, %v492
    %v497 = vand.u32 2147483647, %v485
    %vm498 = vcmp.eq.f32.partialorder %v497, 8.507059e+37
    %v499 = vand.u32 %v485, 2147483648
    %v500 = vor.u32 1.1754944e-38, %v499
    %v501 = vsel %vm498, %v500, %v496
    %v502 = vrcp.pop %v487
    %v503 = vmul.f32 %v487, %v502
    %v504 = vsub.f32 1.0, %v503
    %v505 = vmul.f32 %v502, %v504
    %v506 = vadd.f32 %v502, %v505
    %vm507 = vweird.f32 %v487
    %vm508 = vweird.f32 %v502
    %vm509 = vmor %vm507, %vm508
    %v510 = vsel %vm509, %v502, %v506
    %v511 = vand.u32 2147483647, %v487
    %vm512 = vcmp.eq.f32.partialorder %v511, 8.507059e+37
    %v513 = vand.u32 %v487, 2147483648
    %v514 = vor.u32 1.1754944e-38, %v513
    %v515 = vsel %vm512, %v514, %v510
    %v516 = vmul.f32 %v481, %v501
    %v517 = vmul.f32 %v483, %v515
    %518 = vst [vmem:[#allocation11] sm:$0xff] %v516
    %519 = vst [vmem:[#allocation11 + $0x8] sm:$0xff] %v517
    // Predicated region
    $region58: #{tpu_custom_call.1} parent=1 // pred_check
      _
    $region59: #{tpu_custom_call.1} parent=1 // pred_check_branch
      %521 = sbr.rel (0) target = $region61
    $region60: #{tpu_custom_call.1} parent=1 // pred_region
      %523 = vsyncadd [#allocation4], 0
      %s524 = sshll.u32 [#allocation11], 4
      %s525 = int_to_ptr.vmem [resolvable:$true] %s524
      %s526 = sshll.u32 %s9, 4
      %s527 = int_to_ptr.hbm [resolvable:$true] %s526
      %532 = dma.vmem_to_hbm [thread:$0]  %s525, 256, %s527, [#allocation4], 128, 128, 8
    $region61: #{tpu_custom_call.1} parent=1 // pred_fallthru
      _
    // Predicated region
    $region62: #{tpu_custom_call.1} parent=1 // pred_check
      _
    $region63: #{tpu_custom_call.1} parent=1 // pred_check_branch
      %534 = sbr.rel (0) target = $region65
    $region64: #{tpu_custom_call.1} parent=1 // pred_region
      %536 = dma.done [#allocation4], 256
    $region65: #{tpu_custom_call.1} parent=1 // pred_fallthru
      _
    %537 = vsyncpa [#allocation3], 1
    %538 = vsyncpa [#allocation6], 1
    %539 = vsyncpa [#allocation9], 1
    %540 = vsyncpa [#allocation4], 1

</llo_original>
